<compile_context>
chip_gen: v5e
topology: v5e:2x2
jax: 0.10.0
libtpu: 0.0.40
codegen_flags: <defaults>
</compile_context>

<pallas_src>
import jax
import jax.numpy as jnp
from jax.experimental import pallas as pl
from jax.experimental.pallas import tpu as pltpu

_SUBLANE = 8
_LANE = 128


def _round_up(x, m):
    return ((x + m - 1) // m) * m


def _vmem_capacity_bytes():
    try:
        return int(pltpu.get_tpu_info().vmem_capacity_bytes)
    except Exception:
        # Conservative fallback (v7x-sized) so a failed query can never make us
        # request more VMEM than the chip has.
        return 64 * 2**20


# --------------------------------------------------------------------------
# Kernels
# --------------------------------------------------------------------------
def _mlp_resident_kernel(x_ref, w1_ref, b1_ref, w2_ref, b2_ref, o_ref):
    # Whole hidden dim resident in VMEM: one fused pass, f32 MXU accumulation.
    h = jnp.dot(x_ref[...], w1_ref[...], preferred_element_type=jnp.float32)
    h = jnp.maximum(h + b1_ref[...], 0.0)
    out = jnp.dot(h.astype(w2_ref.dtype), w2_ref[...],
                  preferred_element_type=jnp.float32)
    o_ref[...] = (out + b2_ref[...]).astype(o_ref.dtype)


def _mlp_streamed_kernel_f32out(x_ref, w1_ref, b1_ref, w2_ref, b2_ref, o_ref):
    # Hidden dim streamed in chunks; the f32 output block (constant index
    # across the reduction axis -> resident) doubles as the accumulator.
    k = pl.program_id(1)

    @pl.when(k == 0)
    def _():
        o_ref[...] = pl.broadcast_to(b2_ref[...], o_ref.shape)

    h = jnp.dot(x_ref[...], w1_ref[...], preferred_element_type=jnp.float32)
    h = jnp.maximum(h + b1_ref[...], 0.0)
    o_ref[...] += jnp.dot(h.astype(w2_ref.dtype), w2_ref[...],
                          preferred_element_type=jnp.float32)


def _mlp_streamed_kernel(x_ref, w1_ref, b1_ref, w2_ref, b2_ref, o_ref, acc_ref):
    # Non-f32 outputs: accumulate in an f32 VMEM scratch, cast once at the end.
    k = pl.program_id(1)

    @pl.when(k == 0)
    def _():
        acc_ref[...] = jnp.zeros_like(acc_ref)

    h = jnp.dot(x_ref[...], w1_ref[...], preferred_element_type=jnp.float32)
    h = jnp.maximum(h + b1_ref[...], 0.0)
    acc_ref[...] += jnp.dot(h.astype(w2_ref.dtype), w2_ref[...],
                            preferred_element_type=jnp.float32)

    @pl.when(k == pl.num_programs(1) - 1)
    def _():
        o_ref[...] = (acc_ref[...] + b2_ref[...]).astype(o_ref.dtype)


# --------------------------------------------------------------------------
# Planning helpers
# --------------------------------------------------------------------------
def _vmem_estimate(block_b, n_in, nh, n_out, cbytes, obytes):
    """Per-step VMEM footprint: double-buffered pipeline tiles + temporaries."""
    e = 2 * block_b * n_in * cbytes               # X tiles
    e += 2 * block_b * n_out * obytes             # O tiles
    e += 2 * (n_in * nh + nh * n_out) * cbytes    # W1 / W2 tiles
    e += 2 * (nh + n_out) * 4                     # f32 bias tiles
    e += block_b * nh * 4                         # h intermediate (f32)
    if cbytes < 4:
        e += block_b * nh * cbytes                # bf16 copy of h fed to MXU
    e += block_b * n_out * 4                      # f32 accumulator / epilogue
    e += 2 * 2**20                                # Mosaic internal scratch margin
    return e


def _choose_block_b(B, two_tc):
    if two_tc:
        # v7x-class (2 TensorCores): split the batch across cores only when
        # each half still keeps the 256-wide MXU busy.
        if B >= 512:
            return min(512, _round_up(pl.cdiv(B, 2), _SUBLANE))
        return B
    # Single TensorCore (v5e/v6e): the grid is a serial loop — never split a
    # small/medium batch; stream very large batches in 512-row tiles.
    return B if B <= 1024 else 512


def prepare_mlp_params(w1, b1, w2, b2, *, compute_dtype=None, batch_hint=512,
                       block_h=None):
    """One-time (init-time) parameter prep: residency/tiling plan, hidden-dim
    padding for the streamed case, and casting to the MXU compute dtype.
    Call once and reuse; nothing here should run per forward pass."""
    n_in, n_hidden = w1.shape
    n_out = w2.shape[1]
    vmem_cap = _vmem_capacity_bytes()
    budget = int(vmem_cap * 0.80)
    block_b_guess = max(_SUBLANE, min(int(batch_hint), 512))

    fits_resident_f32 = _vmem_estimate(block_b_guess, n_in, n_hidden, n_out,
                                       4, 4) <= budget
    if compute_dtype is None:
        # Exact f32 semantics when everything is resident anyway; bf16 MXU
        # operands (f32 accumulation) when weights must stream from HBM.
        compute_dtype = w1.dtype if fits_resident_f32 else jnp.bfloat16
    compute_dtype = jnp.dtype(compute_dtype)
    cbytes = compute_dtype.itemsize

    if block_h is not None:                      # explicit override (testing)
        block_h = _round_up(int(block_h), _LANE)
        resident = block_h >= n_hidden
    elif _vmem_estimate(block_b_guess, n_in, n_hidden, n_out, cbytes, 4) <= budget:
        resident = True
    else:
        resident = False
        # >= 256 K-tiles keep the 256x256 MXU (v6e/v7x) full; smaller start on
        # v7x-class parts for VMEM headroom.
        block_h = 512 if vmem_cap > 96 * 2**20 else 256
        while (block_h > 256 and
               _vmem_estimate(block_b_guess, n_in, block_h, n_out,
                              cbytes, 4) > budget):
            block_h //= 2
        block_h = min(block_h, _round_up(n_hidden, _LANE))

    if resident:
        n_hid_p = n_hidden
        block_h = n_hidden
        w1_c = w1.astype(compute_dtype)
        w2_c = w2.astype(compute_dtype)
        b1_c = b1.reshape(1, n_hidden).astype(jnp.float32)
    else:
        n_hid_p = _round_up(n_hidden, block_h)
        pad = n_hid_p - n_hidden
        # Zero padding of the hidden dim is exact: relu(0 + 0) = 0 rows
        # contribute nothing to the second matmul.
        w1_c = jnp.pad(w1, ((0, 0), (0, pad))).astype(compute_dtype)
        w2_c = jnp.pad(w2, ((0, pad), (0, 0))).astype(compute_dtype)
        b1_c = jnp.pad(b1, (0, pad)).reshape(1, n_hid_p).astype(jnp.float32)
    b2_c = b2.reshape(1, n_out).astype(jnp.float32)

    return dict(w1=w1_c, b1=b1_c, w2=w2_c, b2=b2_c,
                n_in=n_in, n_hidden=n_hidden, n_out=n_out, n_hid_p=n_hid_p,
                block_h=block_h, resident=resident,
                compute_dtype=compute_dtype, vmem_cap=vmem_cap)


# --------------------------------------------------------------------------
# Forward
# --------------------------------------------------------------------------
def mlp_apply(params, x, *, block_b=None):
    B, n_in = x.shape
    assert n_in == params["n_in"], "feature-dim mismatch"
    n_out = params["n_out"]
    n_hid_p = params["n_hid_p"]
    block_h = params["block_h"]
    resident = params["resident"]
    compute_dtype = params["compute_dtype"]
    out_dtype = x.dtype
    cbytes = compute_dtype.itemsize
    obytes = jnp.dtype(out_dtype).itemsize
    vmem_cap = params["vmem_cap"]
    budget = int(vmem_cap * 0.80)
    two_tc = vmem_cap <= 96 * 2**20          # v7x-class part (64 MiB VMEM, 2 TC)

    # ---- batch tile ----
    if block_b is None:
        block_b = _choose_block_b(B, two_tc)
    if block_b >= B:
        block_b = B                           # full dim is always a legal block
    else:
        block_b = _round_up(block_b, _SUBLANE)
    nh = n_hid_p if resident else block_h
    while (_vmem_estimate(block_b, n_in, nh, n_out, cbytes, obytes) > budget
           and block_b > _SUBLANE):
        block_b = max(_SUBLANE, _round_up(block_b // 2, _SUBLANE))

    nb = pl.cdiv(B, block_b)                  # partial edge block: rows beyond B
    nk = 1 if resident else n_hid_p // block_h  # are garbage but never written.

    est = _vmem_estimate(block_b, n_in, nh, n_out, cbytes, obytes)
    vmem_limit = int(min(vmem_cap * 0.90, max(est * 1.4, 32 * 2**20)))

    x_c = x if x.dtype == compute_dtype else x.astype(compute_dtype)
    w1_c, b1_c, w2_c, b2_c = params["w1"], params["b1"], params["w2"], params["b2"]

    if resident:
        grid_spec = pltpu.PrefetchScalarGridSpec(
            num_scalar_prefetch=0,
            grid=(nb,),
            in_specs=[
                pl.BlockSpec((block_b, n_in), lambda i: (i, 0)),
                pl.BlockSpec((n_in, n_hid_p), lambda i: (0, 0)),
                pl.BlockSpec((1, n_hid_p), lambda i: (0, 0)),
                pl.BlockSpec((n_hid_p, n_out), lambda i: (0, 0)),
                pl.BlockSpec((1, n_out), lambda i: (0, 0)),
            ],
            out_specs=pl.BlockSpec((block_b, n_out), lambda i: (i, 0)),
        )
        return pl.pallas_call(
            _mlp_resident_kernel,
            out_shape=jax.ShapeDtypeStruct((B, n_out), out_dtype),
            grid_spec=grid_spec,
            compiler_params=pltpu.CompilerParams(
                dimension_semantics=("parallel",),
                vmem_limit_bytes=vmem_limit),
        )(x_c, w1_c, b1_c, w2_c, b2_c)

    # Streamed hidden dim: (batch-parallel, hidden-reduction) grid.
    f32_out = out_dtype == jnp.float32
    kernel = _mlp_streamed_kernel_f32out if f32_out else _mlp_streamed_kernel
    scratch = [] if f32_out else [pltpu.VMEM((block_b, n_out), jnp.float32)]
    grid_spec = pltpu.PrefetchScalarGridSpec(
        num_scalar_prefetch=0,
        grid=(nb, nk),
        in_specs=[
            pl.BlockSpec((block_b, n_in), lambda i, k: (i, 0)),
            pl.BlockSpec((n_in, block_h), lambda i, k: (0, k)),
            pl.BlockSpec((1, block_h), lambda i, k: (0, k)),
            pl.BlockSpec((block_h, n_out), lambda i, k: (k, 0)),
            pl.BlockSpec((1, n_out), lambda i, k: (0, 0)),
        ],
        out_specs=pl.BlockSpec((block_b, n_out), lambda i, k: (i, 0)),
        scratch_shapes=scratch,
    )
    return pl.pallas_call(
        kernel,
        out_shape=jax.ShapeDtypeStruct((B, n_out), out_dtype),
        grid_spec=grid_spec,
        compiler_params=pltpu.CompilerParams(
            dimension_semantics=("parallel", "arbitrary"),
            vmem_limit_bytes=vmem_limit),
    )(x_c, w1_c, b1_c, w2_c, b2_c)


def mlp_forward(x, w1, b1, w2, b2, *, block_b=None, **prep_kwargs):
    """One-shot convenience wrapper (prefer prepare_mlp_params once + mlp_apply)."""
    params = prepare_mlp_params(w1, b1, w2, b2, batch_hint=x.shape[0],
                                **prep_kwargs)
    return mlp_apply(params, x, block_b=block_b)


def mlp_reference(x, w1, b1, w2, b2):
    h = jnp.maximum(x @ w1 + b1, 0.0)
    return h @ w2 + b2


if __name__ == "__main__":
    # Small shapes consistent with the module: n_in=32, n_hidden=64, n_out=16.
    B, n_in, n_hidden, n_out = 8, 32, 64, 16

    key = jax.random.PRNGKey(0)
    kx, k1, kb1, k2, kb2 = jax.random.split(key, 5)

    x = jax.random.normal(kx, (B, n_in), dtype=jnp.float32)
    lim1 = n_in ** -0.5
    w1 = jax.random.uniform(k1, (n_in, n_hidden), jnp.float32, -lim1, lim1)
    b1 = jax.random.uniform(kb1, (n_hidden,), jnp.float32, -lim1, lim1)
    lim2 = n_hidden ** -0.5
    w2 = jax.random.uniform(k2, (n_hidden, n_out), jnp.float32, -lim2, lim2)
    b2 = jax.random.uniform(kb2, (n_out,), jnp.float32, -lim2, lim2)

    ref = mlp_reference(x, w1, b1, w2, b2)

    # 1) Common path: weights resident, exact f32 semantics, no padding at all.
    params = prepare_mlp_params(w1, b1, w2, b2, batch_hint=B)
    out = jax.block_until_ready(mlp_apply(params, x))
    assert out.shape == (B, n_out)
    assert jnp.allclose(out, ref, atol=1e-5, rtol=1e-5), "resident f32 mismatch"

    # 2) Streamed hidden-dim path, forced at toy size (block_h=128, n_hidden=256):
    #    exercises the reduction grid axis + accumulate-into-output pattern.
    B2, n_hidden2 = 16, 256
    x2 = jax.random.normal(kx, (B2, n_in), dtype=jnp.float32)
    w1b = jax.random.uniform(k1, (n_in, n_hidden2), jnp.float32, -lim1, lim1)
    b1b = jax.random.uniform(kb1, (n_hidden2,), jnp.float32, -lim1, lim1)
    lim2b = n_hidden2 ** -0.5
    w2b = jax.random.uniform(k2, (n_hidden2, n_out), jnp.float32, -lim2b, lim2b)
    b2b = jax.random.uniform(kb2, (n_out,), jnp.float32, -lim2b, lim2b)
    ref2 = mlp_reference(x2, w1b, b1b, w2b, b2b)
    params2 = prepare_mlp_params(w1b, b1b, w2b, b2b, compute_dtype=jnp.float32,
                                 batch_hint=B2, block_h=128)
    out2 = jax.block_until_ready(mlp_apply(params2, x2))
    assert out2.shape == (B2, n_out)
    assert jnp.allclose(out2, ref2, atol=1e-5, rtol=1e-5), "streamed f32 mismatch"

    # 3) bf16 MXU operands (default for large/streamed shapes), f32 accumulation.
    params3 = prepare_mlp_params(w1, b1, w2, b2, compute_dtype=jnp.bfloat16,
                                 batch_hint=B)
    out3 = jax.block_until_ready(mlp_apply(params3, x))
    assert jnp.allclose(out3, ref, atol=6e-2, rtol=6e-2), "bf16 mismatch"

    print("KERNEL_OK")
</pallas_src>

<mosaic_0001>
module attributes {stable_mosaic.version = 11 : i64} {
  func.func @_mlp_resident_kernel(%arg0: i32, %arg1: memref<8x32xf32, #tpu.memory_space<vmem>>, %arg2: memref<32x64xf32, #tpu.memory_space<vmem>>, %arg3: memref<1x64xf32, #tpu.memory_space<vmem>>, %arg4: memref<64x16xf32, #tpu.memory_space<vmem>>, %arg5: memref<1x16xf32, #tpu.memory_space<vmem>>, %arg6: memref<8x16xf32, #tpu.memory_space<vmem>>) attributes {dimension_semantics = [#tpu.dimension_semantics<parallel>], iteration_bounds = array<i64: 1>, scalar_prefetch = 0 : i64, scratch_operands = 0 : i64, tpu.core_type = #tpu.core_type<tc>, window_params = [{transform_indices = @transform_0, window_bounds = array<i64: 8, 32>}, {pipeline_mode = #tpu.pipeline_mode<synchronous>, transform_indices = @transform_1, window_bounds = array<i64: 32, 64>}, {pipeline_mode = #tpu.pipeline_mode<synchronous>, transform_indices = @transform_2, window_bounds = array<i64: 1, 64>}, {pipeline_mode = #tpu.pipeline_mode<synchronous>, transform_indices = @transform_3, window_bounds = array<i64: 64, 16>}, {pipeline_mode = #tpu.pipeline_mode<synchronous>, transform_indices = @transform_4, window_bounds = array<i64: 1, 16>}, {transform_indices = @transform_5, window_bounds = array<i64: 8, 16>}]} {
    %c0 = arith.constant 0 : index
    %c0_0 = arith.constant 0 : index
    %0 = vector.load %arg1[%c0, %c0_0] : memref<8x32xf32, #tpu.memory_space<vmem>>, vector<8x32xf32>
    %c0_1 = arith.constant 0 : index
    %c0_2 = arith.constant 0 : index
    %1 = vector.load %arg2[%c0_1, %c0_2] : memref<32x64xf32, #tpu.memory_space<vmem>>, vector<32x64xf32>
    %cst = arith.constant dense<0.000000e+00> : vector<8x64xf32>
    %2 = tpu.matmul %0, %1, %cst {dimension_numbers = #tpu.dot_dimension_numbers<[1], [0], [0], [1], [0, 0, 1, 1], [], []>} : vector<8x32xf32>, vector<32x64xf32>, vector<8x64xf32> -> vector<8x64xf32>
    %c0_3 = arith.constant 0 : index
    %c0_4 = arith.constant 0 : index
    %3 = vector.load %arg3[%c0_3, %c0_4] : memref<1x64xf32, #tpu.memory_space<vmem>>, vector<1x64xf32>
    %4 = vector.broadcast %3 : vector<1x64xf32> to vector<8x64xf32>
    %5 = arith.addf %2, %4 : vector<8x64xf32>
    %cst_5 = arith.constant 0.000000e+00 : f32
    %6 = vector.broadcast %cst_5 : f32 to vector<8x64xf32>
    %7 = arith.maximumf %5, %6 : vector<8x64xf32>
    %c0_6 = arith.constant 0 : index
    %c0_7 = arith.constant 0 : index
    %8 = vector.load %arg4[%c0_6, %c0_7] : memref<64x16xf32, #tpu.memory_space<vmem>>, vector<64x16xf32>
    %cst_8 = arith.constant dense<0.000000e+00> : vector<8x16xf32>
    %9 = tpu.matmul %7, %8, %cst_8 {dimension_numbers = #tpu.dot_dimension_numbers<[1], [0], [0], [1], [0, 0, 1, 1], [], []>} : vector<8x64xf32>, vector<64x16xf32>, vector<8x16xf32> -> vector<8x16xf32>
    %c0_9 = arith.constant 0 : index
    %c0_10 = arith.constant 0 : index
    %10 = vector.load %arg5[%c0_9, %c0_10] : memref<1x16xf32, #tpu.memory_space<vmem>>, vector<1x16xf32>
    %11 = vector.broadcast %10 : vector<1x16xf32> to vector<8x16xf32>
    %12 = arith.addf %9, %11 : vector<8x16xf32>
    %c0_11 = arith.constant 0 : index
    %c0_12 = arith.constant 0 : index
    %13 = vector.load %arg6[%c0_11, %c0_12] : memref<8x16xf32, #tpu.memory_space<vmem>>, vector<8x16xf32>
    tpu.vector_store %arg6[%c0_11, %c0_12], %12 {strides = array<i32>} : memref<8x16xf32, #tpu.memory_space<vmem>>, vector<8x16xf32>,
    return
  }
  func.func @transform_0(%arg0: i32) -> (i32, i32) {
    %c0_i32 = arith.constant 0 : i32
    %c0_i32_0 = arith.constant 0 : i32
    return %arg0, %c0_i32 : i32, i32
  }
  func.func @transform_1(%arg0: i32) -> (i32, i32) {
    %c0_i32 = arith.constant 0 : i32
    %c0_i32_0 = arith.constant 0 : i32
    %c0_i32_1 = arith.constant 0 : i32
    return %c0_i32, %c0_i32_0 : i32, i32
  }
  func.func @transform_2(%arg0: i32) -> (i32, i32) {
    %c0_i32 = arith.constant 0 : i32
    %c0_i32_0 = arith.constant 0 : i32
    %c0_i32_1 = arith.constant 0 : i32
    return %c0_i32, %c0_i32_0 : i32, i32
  }
  func.func @transform_3(%arg0: i32) -> (i32, i32) {
    %c0_i32 = arith.constant 0 : i32
    %c0_i32_0 = arith.constant 0 : i32
    %c0_i32_1 = arith.constant 0 : i32
    return %c0_i32, %c0_i32_0 : i32, i32
  }
  func.func @transform_4(%arg0: i32) -> (i32, i32) {
    %c0_i32 = arith.constant 0 : i32
    %c0_i32_0 = arith.constant 0 : i32
    %c0_i32_1 = arith.constant 0 : i32
    return %c0_i32, %c0_i32_0 : i32, i32
  }
  func.func @transform_5(%arg0: i32) -> (i32, i32) {
    %c0_i32 = arith.constant 0 : i32
    %c0_i32_0 = arith.constant 0 : i32
    return %arg0, %c0_i32 : i32, i32
  }
}

</mosaic_0001>

<llo_original>
// kernel: tpu_custom_call.1
$region0: #{tpu_custom_call.1}
  #allocation0 [shape = 'u32[]', space=smem, size = 0x4, offset = 0x4, fixed_abs, tag = 'smem constant byte address 0x4 - core index']
  #allocation1 [shape = 'u32[72,128]{1,0:T(1,128)}', space=vmem, size = 0x9000, scoped, tag = 'internal scratch']
  %s0 = inlined_call_operand.vmem [shape: f32[8,32], index: 0, kind: input, shape index: {}]
  %s1 = inlined_call_operand.vmem [shape: f32[32,64], index: 1, kind: input, shape index: {}]
  %s2 = inlined_call_operand.vmem [shape: f32[1,64], index: 2, kind: input, shape index: {}]
  %s3 = inlined_call_operand.vmem [shape: f32[64,16], index: 3, kind: input, shape index: {}]
  %s4 = inlined_call_operand.vmem [shape: f32[1,16], index: 4, kind: input, shape index: {}]
  %s5 = inlined_call_operand.hbm [shape: f32[8,16], index: 5, kind: output, shape index: {}]
  %s6 = sld [smem:[#allocation0]]
  $region30: #{tpu_custom_call.1} parent=0
    _
  %s8 = ssub.s32 1, %s6
  %s9 = scalar_select 0, %s8, %s6
  $region1: #{tpu_custom_call.1} parent=0
    #allocation2 [shape = 'u8[4096]{0}', space=vmem, size = 0x1000, scoped, tag = 'output window, operand 0, single buffered']
    #allocation3 [shape = 's32[1]{0}', space=sflag, size = 0x4, scoped, tag = 'scoped memory for tpu_custom_call.1']
    %10 = vsyncpa [#allocation3], 0
    // Predicated region
    $region2: #{tpu_custom_call.1} parent=1 // pred_check
      _
    $region3: #{tpu_custom_call.1} parent=1 // pred_check_branch
      %12 = sbr.rel (0) target = $region5
    $region4: #{tpu_custom_call.1} parent=1 // pred_region
      _
    $region5: #{tpu_custom_call.1} parent=1 // pred_fallthru
      _
    // Predicated region
    $region6: #{tpu_custom_call.1} parent=1 // pred_check
      _
    $region7: #{tpu_custom_call.1} parent=1 // pred_check_branch
      %14 = sbr.rel (0) target = $region9
    $region8: #{tpu_custom_call.1} parent=1 // pred_region
      _
    $region9: #{tpu_custom_call.1} parent=1 // pred_fallthru
      _
    // Predicated region
    $region10: #{tpu_custom_call.1} parent=1 // pred_check
      _
    $region11: #{tpu_custom_call.1} parent=1 // pred_check_branch
      %16 = sbr.rel (0) target = $region13
    $region12: #{tpu_custom_call.1} parent=1 // pred_region
      _
    $region13: #{tpu_custom_call.1} parent=1 // pred_fallthru
      _
    // Predicated region
    $region14: #{tpu_custom_call.1} parent=1 // pred_check
      _
    $region15: #{tpu_custom_call.1} parent=1 // pred_check_branch
      %18 = sbr.rel (0) target = $region17
    $region16: #{tpu_custom_call.1} parent=1 // pred_region
      _
    $region17: #{tpu_custom_call.1} parent=1 // pred_fallthru
      _
    // Predicated region
    $region18: #{tpu_custom_call.1} parent=1 // pred_check
      _
    $region19: #{tpu_custom_call.1} parent=1 // pred_check_branch
      %20 = sbr.rel (0) target = $region21
    $region20: #{tpu_custom_call.1} parent=1 // pred_region
      _
    $region21: #{tpu_custom_call.1} parent=1 // pred_fallthru
      _
    %v21 = vld [vmem:[%s0] sm:$0xff]
    %v22 = vld [vmem:[%s1] sm:$0xff]
    %v23 = vld [vmem:[%s1 + $0x8] sm:$0xff]
    %v24 = vld [vmem:[%s1 + $0x10] sm:$0xff]
    %v25 = vld [vmem:[%s1 + $0x18] sm:$0xff]
    %v26 = vld [vmem:[%s2] sm:$0x1]
    %v28 = vperm.slane %v26, 0
    %vm30 = vcmask 261120
    %v32 = vsel %vm30, %v21, 0
    %34 = vmatpush.msra.mxu0 0.0
    %35 = vmatpush.msra.mxu0 0.0
    %36 = vmatpush.msra.mxu0 0.0
    %37 = vmatpush.msra.mxu0 0.0
    %38 = vmatpush.msra.mxu0 0.0
    %39 = vmatpush.msra.mxu0 0.0
    %40 = vmatpush.msra.mxu0 0.0
    %41 = vmatpush.msra.mxu0 0.0
    %42 = vmatpush.msra.mxu0 0.0
    %43 = vmatpush.msra.mxu0 0.0
    %44 = vmatpush.msra.mxu0 0.0
    %45 = vmatpush.msra.mxu0 0.0
    %46 = vmatpush.msra.mxu0 %v25
    %47 = vmatpush.msra.mxu0 %v24
    %48 = vmatpush.msra.mxu0 %v23
    %49 = vmatpush.msra.mxu0 %v22
    %50 = vmatmul.f32.gmra.mxu0 %v32
    %v51 = vpop.f32.mrf.mxu0
    %v52 = vadd.f32 %v28, %v51
    %53 = vdwg.mxu0
    %v54 = vmax.f32 %v52, 0.0
    %v55 = vld [vmem:[%s3] sm:$0xff]
    %v56 = vld [vmem:[%s3 + $0x8] sm:$0xff]
    %v57 = vld [vmem:[%s3 + $0x10] sm:$0xff]
    %v58 = vld [vmem:[%s3 + $0x18] sm:$0xff]
    %v59 = vld [vmem:[%s3 + $0x20] sm:$0xff]
    %v60 = vld [vmem:[%s3 + $0x28] sm:$0xff]
    %v61 = vld [vmem:[%s3 + $0x30] sm:$0xff]
    %v62 = vld [vmem:[%s3 + $0x38] sm:$0xff]
    %v63 = vld [vmem:[%s4] sm:$0x1]
    %v65 = vperm.slane %v63, 0
    %vm67 = vcmask 523264
    %v69 = vsel %vm67, %v54, 0
    %71 = vmatpush.msra.mxu0 0.0
    %72 = vmatpush.msra.mxu0 0.0
    %73 = vmatpush.msra.mxu0 0.0
    %74 = vmatpush.msra.mxu0 0.0
    %75 = vmatpush.msra.mxu0 0.0
    %76 = vmatpush.msra.mxu0 0.0
    %77 = vmatpush.msra.mxu0 0.0
    %78 = vmatpush.msra.mxu0 0.0
    %79 = vmatpush.msra.mxu0 %v62
    %80 = vmatpush.msra.mxu0 %v61
    %81 = vmatpush.msra.mxu0 %v60
    %82 = vmatpush.msra.mxu0 %v59
    %83 = vmatpush.msra.mxu0 %v58
    %84 = vmatpush.msra.mxu0 %v57
    %85 = vmatpush.msra.mxu0 %v56
    %86 = vmatpush.msra.mxu0 %v55
    %87 = vmatmul.f32.gmra.mxu0 %v69
    %v88 = vpop.f32.mrf.mxu0
    %v89 = vadd.f32 %v65, %v88
    %90 = vdwg.mxu0
    %vm91 = vcmask 130048
    %92 = vst.msk [vmem:[#allocation2] sm:$0xff] %vm91, %v89
    // Predicated region
    $region22: #{tpu_custom_call.1} parent=1 // pred_check
      _
    $region23: #{tpu_custom_call.1} parent=1 // pred_check_branch
      %94 = sbr.rel (0) target = $region25
    $region24: #{tpu_custom_call.1} parent=1 // pred_region
      %96 = vsyncadd [#allocation3], 0
      %s98 = sshll.u32 [#allocation2], 4
      %s99 = int_to_ptr.vmem [resolvable:$true] %s98
      %s100 = sshll.u32 %s5, 4
      %s101 = int_to_ptr.hbm [resolvable:$true] %s100
      %103 = dma.vmem_to_hbm [thread:$0]  %s99, 128, %s101, [#allocation3]
    $region25: #{tpu_custom_call.1} parent=1 // pred_fallthru
      _
    // Predicated region
    $region26: #{tpu_custom_call.1} parent=1 // pred_check
      _
    $region27: #{tpu_custom_call.1} parent=1 // pred_check_branch
      %105 = sbr.rel (0) target = $region29
    $region28: #{tpu_custom_call.1} parent=1 // pred_region
      %107 = dma.done [#allocation3], 128
    $region29: #{tpu_custom_call.1} parent=1 // pred_fallthru
      _
    %108 = vsyncpa [#allocation3], 1

</llo_original>
